<compile_context>
chip_gen: v5e
topology: v5e:2x2
jax: 0.10.0
libtpu: 0.0.40
codegen_flags: <defaults>
</compile_context>

<pallas_src>
import math
import functools

import jax
import jax.numpy as jnp
from jax.experimental import pallas as pl
from jax.experimental.pallas import tpu as pltpu


VMEM_LIMIT_BYTES = 48 * 1024 * 1024   # above the 16/32 MiB scoped defaults,
                                      # below every generation's physical VMEM
# Set False for bit-level parity of the softmax denominator with torch.
APPROX_RECIPROCAL = True


# ----------------------------------------------------------------------------
# In-kernel helpers
# ----------------------------------------------------------------------------
def _layer_norm(x, gamma, beta, eps=1e-5):
    mean = jnp.mean(x, axis=-1, keepdims=True)
    var = jnp.mean((x - mean) ** 2, axis=-1, keepdims=True)
    inv = jax.lax.rsqrt(var + eps)
    return (x - mean) * inv * gamma + beta


# ----------------------------------------------------------------------------
# Pallas kernels
# ----------------------------------------------------------------------------
def transformer_layer_kernel(
    x_ref,            # (TILE_M, D) fp32  flattened tokens (whole sequences)
    wqkv_ref,         # (D, 3D)     bf16  fused q/k/v projection (q pre-scaled)
    wo_ref,           # (D, D)      bf16
    w1_ref,           # (D, F)      bf16
    w2_ref,           # (F, D)      bf16
    bqkv_ref,         # (1, 3D)     fp32
    b1_ref,           # (1, F)      fp32
    vecs_ref,         # (8, D)      fp32  rows: [bo, ln1_g, ln1_b, b2, ln2_g, ln2_b, 0, 0]
    o_ref,            # (TILE_M, D) fp32
    *, n_seq, seq_len, ffn_chunk, n_ffn_chunks,
):
    """One transformer layer (self-attn + FFN) on a tile of whole sequences."""
    d = wo_ref.shape[0]
    x = x_ref[...]                                             # (TILE_M, D) fp32

    bo    = vecs_ref[0:1, :]
    ln1_g = vecs_ref[1:2, :]
    ln1_b = vecs_ref[2:3, :]
    b2    = vecs_ref[3:4, :]
    ln2_g = vecs_ref[4:5, :]
    ln2_b = vecs_ref[5:6, :]

    # --- fused QKV projection: single bf16 MXU matmul with N = 3*D -----------
    qkv = jnp.dot(x.astype(jnp.bfloat16), wqkv_ref[...],
                  preferred_element_type=jnp.float32)
    qkv = qkv + bqkv_ref[...]
    # 1/sqrt(D) already folded into the q weights/bias at parameter-build time.
    q = qkv[:, 0 * d:1 * d].reshape(n_seq, seq_len, d).astype(jnp.bfloat16)
    k = qkv[:, 1 * d:2 * d].reshape(n_seq, seq_len, d).astype(jnp.bfloat16)
    v = qkv[:, 2 * d:3 * d].reshape(n_seq, seq_len, d).astype(jnp.bfloat16)

    # --- scaled-dot-product self-attention (batched over sequences) ----------
    # Contraction expressed via dot_general so k is consumed untransposed
    # (no XLU vxpose / extra vreg copies).
    s = jax.lax.dot_general(
        q, k, (((2,), (2,)), ((0,), (0,))),
        preferred_element_type=jnp.float32)                    # (n_seq, S, S) fp32
    # TODO(synk): flash-style online-softmax over K/V tiles for large S.
    s = s - jnp.max(s, axis=-1, keepdims=True)
    p = jnp.exp(s)
    l = jnp.sum(p, axis=-1, keepdims=True)                     # (n_seq, S, 1)
    attn = jax.lax.dot_general(
        p.astype(jnp.bfloat16), v, (((2,), (1,)), ((0,), (0,))),
        preferred_element_type=jnp.float32)                    # (n_seq, S, D)
    # Normalize on the (S, D) result instead of the (S, S) probabilities.
    attn = attn * pl.reciprocal(l, approx=APPROX_RECIPROCAL)
    attn = attn.reshape(n_seq * seq_len, d)
    attn = jnp.dot(attn.astype(jnp.bfloat16), wo_ref[...],
                   preferred_element_type=jnp.float32) + bo

    # --- residual + LayerNorm (fp32) ------------------------------------------
    h = _layer_norm(x + attn, ln1_g, ln1_b)
    h16 = h.astype(jnp.bfloat16)

    # --- feed-forward (ReLU), F-chunked with fp32 accumulator -----------------
    y = jnp.zeros((h.shape[0], d), jnp.float32)
    for c in range(n_ffn_chunks):
        lo = c * ffn_chunk
        hi = lo + ffn_chunk
        f = jnp.dot(h16, w1_ref[:, lo:hi], preferred_element_type=jnp.float32)
        f = jnp.maximum(f + b1_ref[:, lo:hi], 0.0)
        y = y + jnp.dot(f.astype(jnp.bfloat16), w2_ref[lo:hi, :],
                        preferred_element_type=jnp.float32)
    y = y + b2

    # --- residual + LayerNorm (fp32) ------------------------------------------
    o_ref[...] = _layer_norm(h + y, ln2_g, ln2_b)


def output_linear_kernel(x_ref, w_ref, b_ref, o_ref):
    """(TILE_M, D) fp32 @ (D, TILE_V) bf16 + (1, TILE_V) fp32."""
    o_ref[...] = (
        jnp.dot(x_ref[...].astype(jnp.bfloat16), w_ref[...],
                preferred_element_type=jnp.float32)
        + b_ref[...]
    )


# ----------------------------------------------------------------------------
# Tile-size heuristics
# ----------------------------------------------------------------------------
def _choose_tile_seqs(batch, seq_len, target_rows=512,
                      score_budget_bytes=8 << 20):
    """Whole sequences per M-tile.

    Aim for ~target_rows rows per tile (keeps the MXU filled, amortizes the
    ~0.35 us per-grid-step overhead); never split below that just to create
    grid steps (a serial loop on v5e/v6e, pure overhead).  The only hard
    constraints are: tile divides the batch, (n*S) is a multiple of 8 (or is
    the full array), and the fp32 (n, S, S) score + prob intermediates stay
    within a modest budget.
    """
    n = max(1, min(batch, target_rows // max(seq_len, 1)))
    while n > 1 and n * seq_len * seq_len * 4 * 2 > score_budget_bytes:
        n -= 1
    while n > 1 and batch % n != 0:
        n -= 1
    if (n * seq_len) % 8 != 0 and n != batch:
        n = batch  # full-array block is always a legal block shape
    return n


def _ffn_chunk_size(f_dim, max_chunk=1024):
    """F-chunk for the FFN accumulator loop (divides F, multiple of 128)."""
    if f_dim <= max_chunk:
        return f_dim
    c = (max_chunk // 128) * 128
    while c >= 128:
        if f_dim % c == 0:
            return c
        c -= 128
    return f_dim


def _pick_tile_rows(m, target=512):
    if m <= target:
        return m
    t = (target // 8) * 8
    while t >= 8:
        if m % t == 0:
            return t
        t -= 8
    return m


def _pick_tile_cols(v, target=2048):
    if v <= target or v % 128 != 0:
        return v
    t = (target // 128) * 128
    while t >= 128:
        if v % t == 0:
            return t
        t -= 128
    return v


# ----------------------------------------------------------------------------
# Wrappers (pallas_call plumbing)
# ----------------------------------------------------------------------------
def transformer_layer(x, params):
    """x: (B, S, D) float32; params: dict of fused/packed layer weights."""
    B, S, D = x.shape
    M = B * S
    F = params["w1"].shape[1]

    n_seq = _choose_tile_seqs(B, S)
    tile_m = n_seq * S
    grid = (M // tile_m,)

    ffn_chunk = _ffn_chunk_size(F)
    n_ffn_chunks = F // ffn_chunk

    kernel = functools.partial(
        transformer_layer_kernel, n_seq=n_seq, seq_len=S,
        ffn_chunk=ffn_chunk, n_ffn_chunks=n_ffn_chunks)

    def full(shape):
        return pl.BlockSpec(shape, lambda i: (0,) * len(shape))

    in_specs = [
        pl.BlockSpec((tile_m, D), lambda i: (i, 0)),   # x (flattened tokens)
        full((D, 3 * D)),                              # wqkv (fused, bf16)
        full((D, D)),                                  # wo   (bf16)
        full((D, F)),                                  # w1   (bf16)
        full((F, D)),                                  # w2   (bf16)
        full((1, 3 * D)),                              # bqkv (fp32)
        full((1, F)),                                  # b1   (fp32)
        full((8, D)),                                  # packed bo/LN/b2 vectors
    ]
    out_spec = pl.BlockSpec((tile_m, D), lambda i: (i, 0))

    out = pl.pallas_call(
        kernel,
        out_shape=jax.ShapeDtypeStruct((M, D), jnp.float32),
        grid=grid,
        in_specs=in_specs,
        out_specs=out_spec,
        compiler_params=pltpu.CompilerParams(
            dimension_semantics=("parallel",),
            vmem_limit_bytes=VMEM_LIMIT_BYTES),
    )(
        x.reshape(M, D),
        params["wqkv"], params["wo"], params["w1"], params["w2"],
        params["bqkv"], params["b1"], params["vecs"],
    )
    return out.reshape(B, S, D)


def output_linear(x, w, b):
    """x: (B, S, D) fp32; w: (D, V) bf16; b: (1, V) fp32 -> (B, S, V) fp32.

    Grid is (V-tiles, M-tiles) with V as the *outer* axis: the (D, tile_v)
    weight block's index only depends on the outer axis, so it stays resident
    in VMEM across the inner M steps instead of being re-streamed per M tile.
    """
    B, S, D = x.shape
    V = w.shape[1]
    M = B * S
    tile_m = _pick_tile_rows(M)
    tile_v = _pick_tile_cols(V)
    grid = (V // tile_v, M // tile_m)

    out = pl.pallas_call(
        output_linear_kernel,
        out_shape=jax.ShapeDtypeStruct((M, V), jnp.float32),
        grid=grid,
        in_specs=[
            pl.BlockSpec((tile_m, D), lambda v, m: (m, 0)),
            pl.BlockSpec((D, tile_v), lambda v, m: (0, v)),
            pl.BlockSpec((1, tile_v), lambda v, m: (0, v)),
        ],
        out_specs=pl.BlockSpec((tile_m, tile_v), lambda v, m: (m, v)),
        compiler_params=pltpu.CompilerParams(
            dimension_semantics=("parallel", "parallel"),
            vmem_limit_bytes=VMEM_LIMIT_BYTES),
    )(x.reshape(M, D), w, b)
    return out.reshape(B, S, V)


# ----------------------------------------------------------------------------
# Parameter construction + full forward
# ----------------------------------------------------------------------------
def create_positional_encoding(max_len, d_model):
    position = jnp.arange(max_len, dtype=jnp.float32)[:, None]
    div_term = jnp.exp(
        jnp.arange(0, d_model, 2, dtype=jnp.float32)
        * (-math.log(10000.0) / d_model)
    )
    pe = jnp.zeros((max_len, d_model), dtype=jnp.float32)
    pe = pe.at[:, 0::2].set(jnp.sin(position * div_term))
    pe = pe.at[:, 1::2].set(jnp.cos(position * div_term))
    return pe[None, :, :]  # (1, max_len, d_model)


def init_layer_params(key, d, f):
    ks = jax.random.split(key, 4)
    s_d = 1.0 / math.sqrt(d)
    s_f = 1.0 / math.sqrt(f)
    attn_scale = 1.0 / math.sqrt(d)

    wqkv = jax.random.normal(ks[0], (d, 3 * d), jnp.float32) * s_d
    bqkv = jnp.zeros((1, 3 * d), jnp.float32)
    # Fold the 1/sqrt(D) attention scale into the q projection (host-side,
    # one-time) so the kernel never scales the (S, S) score matrix.
    wqkv = wqkv.at[:, :d].multiply(attn_scale)
    bqkv = bqkv.at[:, :d].multiply(attn_scale)

    # packed small vectors, rows: [bo, ln1_g, ln1_b, b2, ln2_g, ln2_b, pad, pad]
    vecs = jnp.zeros((8, d), jnp.float32).at[1].set(1.0).at[4].set(1.0)
    return {
        "wqkv": wqkv.astype(jnp.bfloat16),
        "bqkv": bqkv,
        "wo":   (jax.random.normal(ks[1], (d, d), jnp.float32) * s_d
                 ).astype(jnp.bfloat16),
        "w1":   (jax.random.normal(ks[2], (d, f), jnp.float32) * s_d
                 ).astype(jnp.bfloat16),
        "b1":   jnp.zeros((1, f), jnp.float32),
        "w2":   (jax.random.normal(ks[3], (f, d), jnp.float32) * s_f
                 ).astype(jnp.bfloat16),
        "vecs": vecs,
    }


def init_model_params(key, src_vocab, tgt_vocab, embed_dim, ff_dim):
    ks = jax.random.split(key, 5)
    return {
        "src_emb": jax.random.normal(ks[0], (src_vocab, embed_dim), jnp.float32),
        "tgt_emb": jax.random.normal(ks[1], (tgt_vocab, embed_dim), jnp.float32),
        "pe": create_positional_encoding(5000, embed_dim),
        "encoder": init_layer_params(ks[2], embed_dim, ff_dim),
        "decoder": init_layer_params(ks[3], embed_dim, ff_dim),
        "out_w": (jax.random.normal(ks[4], (embed_dim, tgt_vocab), jnp.float32)
                  * (1.0 / math.sqrt(embed_dim))).astype(jnp.bfloat16),
        "out_b": jnp.zeros((1, tgt_vocab), jnp.float32),
    }


@jax.jit
def transformer_forward(params, src, tgt):
    # embedding lookup + positional encoding (glue, plain JAX)
    src_embedded = (jnp.take(params["src_emb"], src, axis=0)
                    + params["pe"][:, : src.shape[1], :])
    tgt_embedded = (jnp.take(params["tgt_emb"], tgt, axis=0)
                    + params["pe"][:, : tgt.shape[1], :])

    enc_output = transformer_layer(src_embedded, params["encoder"])
    # TODO(synk): enc_output is not consumed by the decoder (self-attention-only
    # decoder, matching the module name); it is still computed like the reference.
    del enc_output
    dec_output = transformer_layer(tgt_embedded, params["decoder"])

    return output_linear(dec_output, params["out_w"], params["out_b"])


# ----------------------------------------------------------------------------
# Demo
# ----------------------------------------------------------------------------
if __name__ == "__main__":
    B = 2
    S_SRC = 8
    S_TGT = 8
    EMBED_DIM = 128    # multiples of 128 -> lane-dense blocks, no masked stores
    FF_DIM = 256
    SRC_VOCAB = 256
    TGT_VOCAB = 256

    key = jax.random.PRNGKey(0)
    k_params, k_src, k_tgt = jax.random.split(key, 3)

    params = init_model_params(k_params, SRC_VOCAB, TGT_VOCAB, EMBED_DIM, FF_DIM)
    src = jax.random.randint(k_src, (B, S_SRC), 0, SRC_VOCAB, dtype=jnp.int32)
    tgt = jax.random.randint(k_tgt, (B, S_TGT), 0, TGT_VOCAB, dtype=jnp.int32)

    out = transformer_forward(params, src, tgt)
    jax.block_until_ready(out)

    assert out.shape == (B, S_TGT, TGT_VOCAB), out.shape
    assert out.dtype == jnp.float32
    assert bool(jnp.all(jnp.isfinite(out)))
    print("KERNEL_OK")
</pallas_src>

<mosaic_0001>
module attributes {stable_mosaic.version = 11 : i64} {
  func.func @output_linear_kernel(%arg0: i32, %arg1: i32, %arg2: memref<16x128xf32, #tpu.memory_space<vmem>>, %arg3: memref<128x256xbf16, #tpu.memory_space<vmem>>, %arg4: memref<1x256xf32, #tpu.memory_space<vmem>>, %arg5: memref<16x256xf32, #tpu.memory_space<vmem>>) attributes {dimension_semantics = [#tpu.dimension_semantics<parallel>, #tpu.dimension_semantics<parallel>], iteration_bounds = array<i64: 1, 1>, scalar_prefetch = 0 : i64, scratch_operands = 0 : i64, tpu.core_type = #tpu.core_type<tc>, window_params = [{transform_indices = @transform_0, window_bounds = array<i64: 16, 128>}, {transform_indices = @transform_1, window_bounds = array<i64: 128, 256>}, {transform_indices = @transform_2, window_bounds = array<i64: 1, 256>}, {transform_indices = @transform_3, window_bounds = array<i64: 16, 256>}]} {
    %c0 = arith.constant 0 : index
    %c0_0 = arith.constant 0 : index
    %0 = vector.load %arg2[%c0, %c0_0] : memref<16x128xf32, #tpu.memory_space<vmem>>, vector<16x128xf32>
    %1 = arith.truncf %0 : vector<16x128xf32> to vector<16x128xbf16>
    %c0_1 = arith.constant 0 : index
    %c0_2 = arith.constant 0 : index
    %2 = vector.load %arg3[%c0_1, %c0_2] : memref<128x256xbf16, #tpu.memory_space<vmem>>, vector<128x256xbf16>
    %cst = arith.constant dense<0.000000e+00> : vector<16x256xf32>
    %3 = tpu.matmul %1, %2, %cst {dimension_numbers = #tpu.dot_dimension_numbers<[1], [0], [0], [1], [0, 0, 1, 1], [], []>} : vector<16x128xbf16>, vector<128x256xbf16>, vector<16x256xf32> -> vector<16x256xf32>
    %c0_3 = arith.constant 0 : index
    %c0_4 = arith.constant 0 : index
    %4 = vector.load %arg4[%c0_3, %c0_4] : memref<1x256xf32, #tpu.memory_space<vmem>>, vector<1x256xf32>
    %5 = vector.broadcast %4 : vector<1x256xf32> to vector<16x256xf32>
    %6 = arith.addf %3, %5 : vector<16x256xf32>
    %c0_5 = arith.constant 0 : index
    %c0_6 = arith.constant 0 : index
    %7 = vector.load %arg5[%c0_5, %c0_6] : memref<16x256xf32, #tpu.memory_space<vmem>>, vector<16x256xf32>
    tpu.vector_store %arg5[%c0_5, %c0_6], %6 {strides = array<i32>} : memref<16x256xf32, #tpu.memory_space<vmem>>, vector<16x256xf32>,
    return
  }
  func.func @transform_0(%arg0: i32, %arg1: i32) -> (i32, i32) {
    %c0_i32 = arith.constant 0 : i32
    %c0_i32_0 = arith.constant 0 : i32
    return %arg1, %c0_i32 : i32, i32
  }
  func.func @transform_1(%arg0: i32, %arg1: i32) -> (i32, i32) {
    %c0_i32 = arith.constant 0 : i32
    %c0_i32_0 = arith.constant 0 : i32
    return %c0_i32, %arg0 : i32, i32
  }
  func.func @transform_2(%arg0: i32, %arg1: i32) -> (i32, i32) {
    %c0_i32 = arith.constant 0 : i32
    %c0_i32_0 = arith.constant 0 : i32
    return %c0_i32, %arg0 : i32, i32
  }
  func.func @transform_3(%arg0: i32, %arg1: i32) -> (i32, i32) {
    %c0_i32 = arith.constant 0 : i32
    return %arg1, %arg0 : i32, i32
  }
}

module attributes {stable_mosaic.version = 11 : i64} {
  func.func @transformer_layer_kernel(%arg0: i32, %arg1: memref<16x128xf32, #tpu.memory_space<vmem>>, %arg2: memref<128x384xbf16, #tpu.memory_space<vmem>>, %arg3: memref<128x128xbf16, #tpu.memory_space<vmem>>, %arg4: memref<128x256xbf16, #tpu.memory_space<vmem>>, %arg5: memref<256x128xbf16, #tpu.memory_space<vmem>>, %arg6: memref<1x384xf32, #tpu.memory_space<vmem>>, %arg7: memref<1x256xf32, #tpu.memory_space<vmem>>, %arg8: memref<8x128xf32, #tpu.memory_space<vmem>>, %arg9: memref<16x128xf32, #tpu.memory_space<vmem>>) attributes {dimension_semantics = [#tpu.dimension_semantics<parallel>], iteration_bounds = array<i64: 1>, scalar_prefetch = 0 : i64, scratch_operands = 0 : i64, tpu.core_type = #tpu.core_type<tc>, window_params = [{transform_indices = @transform_0, window_bounds = array<i64: 16, 128>}, {pipeline_mode = #tpu.pipeline_mode<synchronous>, transform_indices = @transform_1, window_bounds = array<i64: 128, 384>}, {pipeline_mode = #tpu.pipeline_mode<synchronous>, transform_indices = @transform_2, window_bounds = array<i64: 128, 128>}, {pipeline_mode = #tpu.pipeline_mode<synchronous>, transform_indices = @transform_3, window_bounds = array<i64: 128, 256>}, {pipeline_mode = #tpu.pipeline_mode<synchronous>, transform_indices = @transform_4, window_bounds = array<i64: 256, 128>}, {pipeline_mode = #tpu.pipeline_mode<synchronous>, transform_indices = @transform_5, window_bounds = array<i64: 1, 384>}, {pipeline_mode = #tpu.pipeline_mode<synchronous>, transform_indices = @transform_6, window_bounds = array<i64: 1, 256>}, {pipeline_mode = #tpu.pipeline_mode<synchronous>, transform_indices = @transform_7, window_bounds = array<i64: 8, 128>}, {transform_indices = @transform_8, window_bounds = array<i64: 16, 128>}]} {
    %c0 = arith.constant 0 : index
    %c0_0 = arith.constant 0 : index
    %0 = vector.load %arg1[%c0, %c0_0] : memref<16x128xf32, #tpu.memory_space<vmem>>, vector<16x128xf32>
    %c0_1 = arith.constant 0 : index
    %c0_2 = arith.constant 0 : index
    %1 = vector.load %arg8[%c0_1, %c0_2] : memref<8x128xf32, #tpu.memory_space<vmem>>, vector<1x128xf32>
    %c1 = arith.constant 1 : index
    %c0_3 = arith.constant 0 : index
    %2 = vector.load %arg8[%c1, %c0_3] : memref<8x128xf32, #tpu.memory_space<vmem>>, vector<1x128xf32>
    %c2 = arith.constant 2 : index
    %c0_4 = arith.constant 0 : index
    %3 = vector.load %arg8[%c2, %c0_4] : memref<8x128xf32, #tpu.memory_space<vmem>>, vector<1x128xf32>
    %c3 = arith.constant 3 : index
    %c0_5 = arith.constant 0 : index
    %4 = vector.load %arg8[%c3, %c0_5] : memref<8x128xf32, #tpu.memory_space<vmem>>, vector<1x128xf32>
    %c4 = arith.constant 4 : index
    %c0_6 = arith.constant 0 : index
    %5 = vector.load %arg8[%c4, %c0_6] : memref<8x128xf32, #tpu.memory_space<vmem>>, vector<1x128xf32>
    %c5 = arith.constant 5 : index
    %c0_7 = arith.constant 0 : index
    %6 = vector.load %arg8[%c5, %c0_7] : memref<8x128xf32, #tpu.memory_space<vmem>>, vector<1x128xf32>
    %7 = arith.truncf %0 : vector<16x128xf32> to vector<16x128xbf16>
    %c0_8 = arith.constant 0 : index
    %c0_9 = arith.constant 0 : index
    %8 = vector.load %arg2[%c0_8, %c0_9] : memref<128x384xbf16, #tpu.memory_space<vmem>>, vector<128x384xbf16>
    %cst = arith.constant dense<0.000000e+00> : vector<16x384xf32>
    %9 = tpu.matmul %7, %8, %cst {dimension_numbers = #tpu.dot_dimension_numbers<[1], [0], [0], [1], [0, 0, 1, 1], [], []>} : vector<16x128xbf16>, vector<128x384xbf16>, vector<16x384xf32> -> vector<16x384xf32>
    %c0_10 = arith.constant 0 : index
    %c0_11 = arith.constant 0 : index
    %10 = vector.load %arg6[%c0_10, %c0_11] : memref<1x384xf32, #tpu.memory_space<vmem>>, vector<1x384xf32>
    %11 = vector.broadcast %10 : vector<1x384xf32> to vector<16x384xf32>
    %12 = arith.addf %9, %11 : vector<16x384xf32>
    %13 = vector.extract_strided_slice %12 {offsets = [0, 0], sizes = [16, 128], strides = [1, 1]} : vector<16x384xf32> to vector<16x128xf32>
    %14 = vector.shape_cast %13 : vector<16x128xf32> to vector<2x8x128xf32>
    %15 = arith.truncf %14 : vector<2x8x128xf32> to vector<2x8x128xbf16>
    %16 = vector.extract_strided_slice %12 {offsets = [0, 128], sizes = [16, 128], strides = [1, 1]} : vector<16x384xf32> to vector<16x128xf32>
    %17 = vector.shape_cast %16 : vector<16x128xf32> to vector<2x8x128xf32>
    %18 = arith.truncf %17 : vector<2x8x128xf32> to vector<2x8x128xbf16>
    %19 = vector.extract_strided_slice %12 {offsets = [0, 256], sizes = [16, 128], strides = [1, 1]} : vector<16x384xf32> to vector<16x128xf32>
    %20 = vector.shape_cast %19 : vector<16x128xf32> to vector<2x8x128xf32>
    %21 = arith.truncf %20 : vector<2x8x128xf32> to vector<2x8x128xbf16>
    %cst_12 = arith.constant dense<0.000000e+00> : vector<2x8x8xf32>
    %22 = tpu.matmul %15, %18, %cst_12 {dimension_numbers = #tpu.dot_dimension_numbers<[2], [2], [1], [1], [0, 0, 0, 1, 1, 1], [0], [0]>} : vector<2x8x128xbf16>, vector<2x8x128xbf16>, vector<2x8x8xf32> -> vector<2x8x8xf32>
    %cst_13 = arith.constant dense<0xFF800000> : vector<2x8xf32>
    %23 = vector.multi_reduction <maximumf>, %22, %cst_13 [2] : vector<2x8x8xf32> to vector<2x8xf32>
    %24 = vector.shape_cast %23 : vector<2x8xf32> to vector<2x8x1xf32>
    %25 = vector.broadcast %24 : vector<2x8x1xf32> to vector<2x8x8xf32>
    %26 = arith.subf %22, %25 : vector<2x8x8xf32>
    %27 = math.exp %26 : vector<2x8x8xf32>
    %cst_14 = arith.constant dense<0.000000e+00> : vector<2x8xf32>
    %28 = vector.multi_reduction <add>, %27, %cst_14 [2] : vector<2x8x8xf32> to vector<2x8xf32>
    %29 = vector.shape_cast %28 : vector<2x8xf32> to vector<2x8x1xf32>
    %30 = arith.truncf %27 : vector<2x8x8xf32> to vector<2x8x8xbf16>
    %cst_15 = arith.constant dense<0.000000e+00> : vector<2x8x128xf32>
    %31 = tpu.matmul %30, %21, %cst_15 {dimension_numbers = #tpu.dot_dimension_numbers<[2], [1], [1], [2], [0, 0, 0, 1, 1, 2], [0], [0]>} : vector<2x8x8xbf16>, vector<2x8x128xbf16>, vector<2x8x128xf32> -> vector<2x8x128xf32>
    %32 = tpu.reciprocal %29 {approx = true} : vector<2x8x1xf32> -> vector<2x8x1xf32>
    %33 = vector.broadcast %32 : vector<2x8x1xf32> to vector<2x8x128xf32>
    %34 = arith.mulf %31, %33 : vector<2x8x128xf32>
    %35 = vector.shape_cast %34 : vector<2x8x128xf32> to vector<16x128xf32>
    %36 = arith.truncf %35 : vector<16x128xf32> to vector<16x128xbf16>
    %c0_16 = arith.constant 0 : index
    %c0_17 = arith.constant 0 : index
    %37 = vector.load %arg3[%c0_16, %c0_17] : memref<128x128xbf16, #tpu.memory_space<vmem>>, vector<128x128xbf16>
    %cst_18 = arith.constant dense<0.000000e+00> : vector<16x128xf32>
    %38 = tpu.matmul %36, %37, %cst_18 {dimension_numbers = #tpu.dot_dimension_numbers<[1], [0], [0], [1], [0, 0, 1, 1], [], []>} : vector<16x128xbf16>, vector<128x128xbf16>, vector<16x128xf32> -> vector<16x128xf32>
    %39 = vector.broadcast %1 : vector<1x128xf32> to vector<16x128xf32>
    %40 = arith.addf %38, %39 : vector<16x128xf32>
    %41 = arith.addf %0, %40 : vector<16x128xf32>
    %cst_19 = arith.constant dense<0.000000e+00> : vector<16xf32>
    %42 = vector.multi_reduction <add>, %41, %cst_19 [1] : vector<16x128xf32> to vector<16xf32>
    %43 = vector.shape_cast %42 : vector<16xf32> to vector<16x1xf32>
    %cst_20 = arith.constant 1.280000e+02 : f32
    %44 = vector.broadcast %cst_20 : f32 to vector<16x1xf32>
    %45 = arith.divf %43, %44 : vector<16x1xf32>
    %46 = vector.broadcast %45 : vector<16x1xf32> to vector<16x128xf32>
    %47 = arith.subf %41, %46 : vector<16x128xf32>
    %48 = arith.mulf %47, %47 : vector<16x128xf32>
    %cst_21 = arith.constant dense<0.000000e+00> : vector<16xf32>
    %49 = vector.multi_reduction <add>, %48, %cst_21 [1] : vector<16x128xf32> to vector<16xf32>
    %50 = vector.shape_cast %49 : vector<16xf32> to vector<16x1xf32>
    %cst_22 = arith.constant 1.280000e+02 : f32
    %51 = vector.broadcast %cst_22 : f32 to vector<16x1xf32>
    %52 = arith.divf %50, %51 : vector<16x1xf32>
    %cst_23 = arith.constant 9.99999974E-6 : f32
    %53 = vector.broadcast %cst_23 : f32 to vector<16x1xf32>
    %54 = arith.addf %52, %53 : vector<16x1xf32>
    %55 = math.rsqrt %54 : vector<16x1xf32>
    %56 = vector.broadcast %45 : vector<16x1xf32> to vector<16x128xf32>
    %57 = arith.subf %41, %56 : vector<16x128xf32>
    %58 = vector.broadcast %55 : vector<16x1xf32> to vector<16x128xf32>
    %59 = arith.mulf %57, %58 : vector<16x128xf32>
    %60 = vector.broadcast %2 : vector<1x128xf32> to vector<16x128xf32>
    %61 = arith.mulf %59, %60 : vector<16x128xf32>
    %62 = vector.broadcast %3 : vector<1x128xf32> to vector<16x128xf32>
    %63 = arith.addf %61, %62 : vector<16x128xf32>
    %64 = arith.truncf %63 : vector<16x128xf32> to vector<16x128xbf16>
    %cst_24 = arith.constant 0.000000e+00 : f32
    %65 = vector.broadcast %cst_24 : f32 to vector<16x128xf32>
    %c0_25 = arith.constant 0 : index
    %c0_26 = arith.constant 0 : index
    %66 = vector.load %arg4[%c0_25, %c0_26] : memref<128x256xbf16, #tpu.memory_space<vmem>>, vector<128x256xbf16>
    %cst_27 = arith.constant dense<0.000000e+00> : vector<16x256xf32>
    %67 = tpu.matmul %64, %66, %cst_27 {dimension_numbers = #tpu.dot_dimension_numbers<[1], [0], [0], [1], [0, 0, 1, 1], [], []>} : vector<16x128xbf16>, vector<128x256xbf16>, vector<16x256xf32> -> vector<16x256xf32>
    %c0_28 = arith.constant 0 : index
    %c0_29 = arith.constant 0 : index
    %68 = vector.load %arg7[%c0_28, %c0_29] : memref<1x256xf32, #tpu.memory_space<vmem>>, vector<1x256xf32>
    %69 = vector.broadcast %68 : vector<1x256xf32> to vector<16x256xf32>
    %70 = arith.addf %67, %69 : vector<16x256xf32>
    %cst_30 = arith.constant 0.000000e+00 : f32
    %71 = vector.broadcast %cst_30 : f32 to vector<16x256xf32>
    %72 = arith.maximumf %70, %71 : vector<16x256xf32>
    %73 = arith.truncf %72 : vector<16x256xf32> to vector<16x256xbf16>
    %c0_31 = arith.constant 0 : index
    %c0_32 = arith.constant 0 : index
    %74 = vector.load %arg5[%c0_31, %c0_32] : memref<256x128xbf16, #tpu.memory_space<vmem>>, vector<256x128xbf16>
    %cst_33 = arith.constant dense<0.000000e+00> : vector<16x128xf32>
    %75 = tpu.matmul %73, %74, %cst_33 {dimension_numbers = #tpu.dot_dimension_numbers<[1], [0], [0], [1], [0, 0, 1, 1], [], []>} : vector<16x256xbf16>, vector<256x128xbf16>, vector<16x128xf32> -> vector<16x128xf32>
    %76 = arith.addf %65, %75 : vector<16x128xf32>
    %77 = vector.broadcast %4 : vector<1x128xf32> to vector<16x128xf32>
    %78 = arith.addf %76, %77 : vector<16x128xf32>
    %79 = arith.addf %63, %78 : vector<16x128xf32>
    %cst_34 = arith.constant dense<0.000000e+00> : vector<16xf32>
    %80 = vector.multi_reduction <add>, %79, %cst_34 [1] : vector<16x128xf32> to vector<16xf32>
    %81 = vector.shape_cast %80 : vector<16xf32> to vector<16x1xf32>
    %cst_35 = arith.constant 1.280000e+02 : f32
    %82 = vector.broadcast %cst_35 : f32 to vector<16x1xf32>
    %83 = arith.divf %81, %82 : vector<16x1xf32>
    %84 = vector.broadcast %83 : vector<16x1xf32> to vector<16x128xf32>
    %85 = arith.subf %79, %84 : vector<16x128xf32>
    %86 = arith.mulf %85, %85 : vector<16x128xf32>
    %cst_36 = arith.constant dense<0.000000e+00> : vector<16xf32>
    %87 = vector.multi_reduction <add>, %86, %cst_36 [1] : vector<16x128xf32> to vector<16xf32>
    %88 = vector.shape_cast %87 : vector<16xf32> to vector<16x1xf32>
    %cst_37 = arith.constant 1.280000e+02 : f32
    %89 = vector.broadcast %cst_37 : f32 to vector<16x1xf32>
    %90 = arith.divf %88, %89 : vector<16x1xf32>
    %cst_38 = arith.constant 9.99999974E-6 : f32
    %91 = vector.broadcast %cst_38 : f32 to vector<16x1xf32>
    %92 = arith.addf %90, %91 : vector<16x1xf32>
    %93 = math.rsqrt %92 : vector<16x1xf32>
    %94 = vector.broadcast %83 : vector<16x1xf32> to vector<16x128xf32>
    %95 = arith.subf %79, %94 : vector<16x128xf32>
    %96 = vector.broadcast %93 : vector<16x1xf32> to vector<16x128xf32>
    %97 = arith.mulf %95, %96 : vector<16x128xf32>
    %98 = vector.broadcast %5 : vector<1x128xf32> to vector<16x128xf32>
    %99 = arith.mulf %97, %98 : vector<16x128xf32>
    %100 = vector.broadcast %6 : vector<1x128xf32> to vector<16x128xf32>
    %101 = arith.addf %99, %100 : vector<16x128xf32>
    %c0_39 = arith.constant 0 : index
    %c0_40 = arith.constant 0 : index
    %102 = vector.load %arg9[%c0_39, %c0_40] : memref<16x128xf32, #tpu.memory_space<vmem>>, vector<16x128xf32>
    tpu.vector_store %arg9[%c0_39, %c0_40], %101 {strides = array<i32>} : memref<16x128xf32, #tpu.memory_space<vmem>>, vector<16x128xf32>,
    return
  }
  func.func @transform_0(%arg0: i32) -> (i32, i32) {
    %c0_i32 = arith.constant 0 : i32
    %c0_i32_0 = arith.constant 0 : i32
    return %arg0, %c0_i32 : i32, i32
  }
  func.func @transform_1(%arg0: i32) -> (i32, i32) {
    %c0_i32 = arith.constant 0 : i32
    %c0_i32_0 = arith.constant 0 : i32
    %c0_i32_1 = arith.constant 0 : i32
    return %c0_i32, %c0_i32_0 : i32, i32
  }
  func.func @transform_2(%arg0: i32) -> (i32, i32) {
    %c0_i32 = arith.constant 0 : i32
    %c0_i32_0 = arith.constant 0 : i32
    %c0_i32_1 = arith.constant 0 : i32
    return %c0_i32, %c0_i32_0 : i32, i32
  }
  func.func @transform_3(%arg0: i32) -> (i32, i32) {
    %c0_i32 = arith.constant 0 : i32
    %c0_i32_0 = arith.constant 0 : i32
    %c0_i32_1 = arith.constant 0 : i32
    return %c0_i32, %c0_i32_0 : i32, i32
  }
  func.func @transform_4(%arg0: i32) -> (i32, i32) {
    %c0_i32 = arith.constant 0 : i32
    %c0_i32_0 = arith.constant 0 : i32
    %c0_i32_1 = arith.constant 0 : i32
    return %c0_i32, %c0_i32_0 : i32, i32
  }
  func.func @transform_5(%arg0: i32) -> (i32, i32) {
    %c0_i32 = arith.constant 0 : i32
    %c0_i32_0 = arith.constant 0 : i32
    %c0_i32_1 = arith.constant 0 : i32
    return %c0_i32, %c0_i32_0 : i32, i32
  }
  func.func @transform_6(%arg0: i32) -> (i32, i32) {
    %c0_i32 = arith.constant 0 : i32
    %c0_i32_0 = arith.constant 0 : i32
    %c0_i32_1 = arith.constant 0 : i32
    return %c0_i32, %c0_i32_0 : i32, i32
  }
  func.func @transform_7(%arg0: i32) -> (i32, i32) {
    %c0_i32 = arith.constant 0 : i32
    %c0_i32_0 = arith.constant 0 : i32
    %c0_i32_1 = arith.constant 0 : i32
    return %c0_i32, %c0_i32_0 : i32, i32
  }
  func.func @transform_8(%arg0: i32) -> (i32, i32) {
    %c0_i32 = arith.constant 0 : i32
    %c0_i32_0 = arith.constant 0 : i32
    return %arg0, %c0_i32 : i32, i32
  }
}

</mosaic_0001>

<llo_original>
// kernel: transformer_forward.3
$region0: #{transformer_forward.3}
  #allocation0 [shape = 'u32[]', space=smem, size = 0x4, offset = 0x4, fixed_abs, tag = 'smem constant byte address 0x4 - core index']
  #allocation1 [shape = 'u32[72,128]{1,0:T(1,128)}', space=vmem, size = 0x9000, scoped, tag = 'internal scratch']
  %s0 = inlined_call_operand.vmem [shape: f32[16,128], index: 0, kind: input, shape index: {}]
  %s1 = inlined_call_operand.hbm [shape: bf16[128,256], index: 1, kind: input, shape index: {}]
  %s2 = inlined_call_operand.hbm [shape: f32[1,256], index: 2, kind: input, shape index: {}]
  %s3 = inlined_call_operand.hbm [shape: f32[16,256], index: 3, kind: output, shape index: {}]
  %s4 = sld [smem:[#allocation0]]
  $region30: #{transformer_forward.3} parent=0
    _
  %s6 = ssub.s32 1, %s4
  %s7 = scalar_select 0, %s6, %s4
  $region1: #{transformer_forward.3} parent=0
    #allocation2 [shape = 'u8[65536]{0}', space=vmem, size = 0x10000, scoped, tag = 'input window, operand 1, single buffered']
    #allocation3 [shape = 's32[1]{0}', space=sflag, size = 0x4, scoped, tag = 'scoped memory for transformer_forward.3']
    #allocation4 [shape = 's32[1]{0}', space=sflag, size = 0x4, scoped, tag = 'scoped memory for transformer_forward.3']
    #allocation5 [shape = 'u8[1024]{0}', space=vmem, size = 0x400, scoped, tag = 'input window, operand 2, single buffered']
    #allocation6 [shape = 's32[1]{0}', space=sflag, size = 0x4, scoped, tag = 'scoped memory for transformer_forward.3']
    #allocation7 [shape = 'u8[16384]{0}', space=vmem, size = 0x4000, scoped, tag = 'output window, operand 0, single buffered']
    %8 = vsyncpa [#allocation3], 0
    %9 = vsyncpa [#allocation6], 0
    %10 = vsyncpa [#allocation4], 0
    // Predicated region
    $region2: #{transformer_forward.3} parent=1 // pred_check
      _
    $region3: #{transformer_forward.3} parent=1 // pred_check_branch
      %12 = sbr.rel (0) target = $region5
    $region4: #{transformer_forward.3} parent=1 // pred_region
      _
    $region5: #{transformer_forward.3} parent=1 // pred_fallthru
      _
    // Predicated region
    $region6: #{transformer_forward.3} parent=1 // pred_check
      _
    $region7: #{transformer_forward.3} parent=1 // pred_check_branch
      %14 = sbr.rel (0) target = $region9
    $region8: #{transformer_forward.3} parent=1 // pred_region
      %16 = vsyncadd [#allocation3], 0
      %s17 = sshll.u32 %s1, 4
      %s18 = int_to_ptr.hbm [resolvable:$true] %s17
      %s19 = sshll.u32 [#allocation2], 4
      %s20 = int_to_ptr.vmem [resolvable:$true] %s19
      %25 = dma.hbm_to_vmem [thread:$0]  %s18, 2048, %s20, [#allocation3], 128, 128, 8
    $region9: #{transformer_forward.3} parent=1 // pred_fallthru
      _
    // Predicated region
    $region10: #{transformer_forward.3} parent=1 // pred_check
      _
    $region11: #{transformer_forward.3} parent=1 // pred_check_branch
      %27 = sbr.rel (0) target = $region13
    $region12: #{transformer_forward.3} parent=1 // pred_region
      %29 = vsyncadd [#allocation6], 0
      %s31 = sshll.u32 %s2, 4
      %s32 = int_to_ptr.hbm [resolvable:$true] %s31
      %s33 = sshll.u32 [#allocation5], 4
      %s34 = int_to_ptr.vmem [resolvable:$true] %s33
      %36 = dma.hbm_to_vmem [thread:$0]  %s32, 32, %s34, [#allocation6]
    $region13: #{transformer_forward.3} parent=1 // pred_fallthru
      _
    // Predicated region
    $region14: #{transformer_forward.3} parent=1 // pred_check
      _
    $region15: #{transformer_forward.3} parent=1 // pred_check_branch
      %38 = sbr.rel (0) target = $region17
    $region16: #{transformer_forward.3} parent=1 // pred_region
      %40 = dma.done [#allocation3], 2048
    $region17: #{transformer_forward.3} parent=1 // pred_fallthru
      _
    // Predicated region
    $region18: #{transformer_forward.3} parent=1 // pred_check
      _
    $region19: #{transformer_forward.3} parent=1 // pred_check_branch
      %42 = sbr.rel (0) target = $region21
    $region20: #{transformer_forward.3} parent=1 // pred_region
      %44 = dma.done [#allocation6], 32
    $region21: #{transformer_forward.3} parent=1 // pred_fallthru
      _
    %v45 = vld [vmem:[%s0] sm:$0xff]
    %v46 = vld [vmem:[%s0 + $0x8] sm:$0xff]
    %v47 = vpack.c.bf16 %v46, %v45
    %v48 = vld [vmem:[#allocation2] sm:$0xff]
    %v49 = vld [vmem:[#allocation2 + $0x8] sm:$0xff]
    %v50 = vld [vmem:[#allocation2 + $0x10] sm:$0xff]
    %v51 = vld [vmem:[#allocation2 + $0x18] sm:$0xff]
    %v52 = vld [vmem:[#allocation2 + $0x20] sm:$0xff]
    %v53 = vld [vmem:[#allocation2 + $0x28] sm:$0xff]
    %v54 = vld [vmem:[#allocation2 + $0x30] sm:$0xff]
    %v55 = vld [vmem:[#allocation2 + $0x38] sm:$0xff]
    %v56 = vld [vmem:[#allocation2 + $0x40] sm:$0xff]
    %v57 = vld [vmem:[#allocation2 + $0x48] sm:$0xff]
    %v58 = vld [vmem:[#allocation2 + $0x50] sm:$0xff]
    %v59 = vld [vmem:[#allocation2 + $0x58] sm:$0xff]
    %v60 = vld [vmem:[#allocation2 + $0x60] sm:$0xff]
    %v61 = vld [vmem:[#allocation2 + $0x68] sm:$0xff]
    %v62 = vld [vmem:[#allocation2 + $0x70] sm:$0xff]
    %v63 = vld [vmem:[#allocation2 + $0x78] sm:$0xff]
    %v64 = vld [vmem:[#allocation5] sm:$0x3]
    %v66 = vperm.slane %v64, 0
    %v67 = vperm.slane %v64, 1
    %v86 = vunpack.c.l.b16 %v48
    %v87 = vunpack.c.h.b16 %v48
    %v88 = vunpack.c.l.b16 %v49
    %v89 = vunpack.c.h.b16 %v49
    %v90 = vunpack.c.l.b16 %v50
    %v91 = vunpack.c.h.b16 %v50
    %v92 = vunpack.c.l.b16 %v51
    %v93 = vunpack.c.h.b16 %v51
    %v94 = vunpack.c.l.b16 %v52
    %v95 = vunpack.c.h.b16 %v52
    %v96 = vunpack.c.l.b16 %v53
    %v97 = vunpack.c.h.b16 %v53
    %v98 = vunpack.c.l.b16 %v54
    %v99 = vunpack.c.h.b16 %v54
    %v100 = vunpack.c.l.b16 %v55
    %v101 = vunpack.c.h.b16 %v55
    %v102 = vunpack.c.l.b16 %v56
    %v103 = vunpack.c.h.b16 %v56
    %v104 = vunpack.c.l.b16 %v57
    %v105 = vunpack.c.h.b16 %v57
    %v106 = vunpack.c.l.b16 %v58
    %v107 = vunpack.c.h.b16 %v58
    %v108 = vunpack.c.l.b16 %v59
    %v109 = vunpack.c.h.b16 %v59
    %v110 = vunpack.c.l.b16 %v60
    %v111 = vunpack.c.h.b16 %v60
    %v112 = vunpack.c.l.b16 %v61
    %v113 = vunpack.c.h.b16 %v61
    %v114 = vunpack.c.l.b16 %v62
    %v115 = vunpack.c.h.b16 %v62
    %v116 = vunpack.c.l.b16 %v63
    %v117 = vunpack.c.h.b16 %v63
    %v118 = vpack.c.b16 %v88, %v86
    %v119 = vpack.c.b16 %v89, %v87
    %v120 = vpack.c.b16 %v92, %v90
    %v121 = vpack.c.b16 %v93, %v91
    %v122 = vpack.c.b16 %v96, %v94
    %v123 = vpack.c.b16 %v97, %v95
    %v124 = vpack.c.b16 %v100, %v98
    %v125 = vpack.c.b16 %v101, %v99
    %v126 = vpack.c.b16 %v104, %v102
    %v127 = vpack.c.b16 %v105, %v103
    %v128 = vpack.c.b16 %v108, %v106
    %v129 = vpack.c.b16 %v109, %v107
    %v130 = vpack.c.b16 %v112, %v110
    %v131 = vpack.c.b16 %v113, %v111
    %v132 = vpack.c.b16 %v116, %v114
    %v133 = vpack.c.b16 %v117, %v115
    %150 = vmatpush.bf16.msra.mxu0 %v132
    %151 = vmatpush.bf16.msra.mxu0 %v130
    %152 = vmatpush.bf16.msra.mxu0 %v128
    %153 = vmatpush.bf16.msra.mxu0 %v126
    %154 = vmatpush.bf16.msra.mxu0 %v124
    %155 = vmatpush.bf16.msra.mxu0 %v122
    %156 = vmatpush.bf16.msra.mxu0 %v120
    %157 = vmatpush.bf16.msra.mxu0 %v118
    %158 = vmatmul.bf16.gmra.mxu0 %v47
    %v159 = vpop.f32.mrf.mxu0
    %v160 = vadd.f32 %v66, %v159
    %v161 = vpop.f32.mrf.mxu0
    %v162 = vadd.f32 %v66, %v161
    %163 = vdwg.mxu0
    %164 = vmatpush.bf16.msra.mxu0 %v133
    %165 = vmatpush.bf16.msra.mxu0 %v131
    %166 = vmatpush.bf16.msra.mxu0 %v129
    %167 = vmatpush.bf16.msra.mxu0 %v127
    %168 = vmatpush.bf16.msra.mxu0 %v125
    %169 = vmatpush.bf16.msra.mxu0 %v123
    %170 = vmatpush.bf16.msra.mxu0 %v121
    %171 = vmatpush.bf16.msra.mxu0 %v119
    %172 = vmatmul.bf16.gmra.mxu0 %v47
    %v173 = vpop.f32.mrf.mxu0
    %v174 = vadd.f32 %v67, %v173
    %v175 = vpop.f32.mrf.mxu0
    %v176 = vadd.f32 %v67, %v175
    %177 = vdwg.mxu0
    %178 = vst [vmem:[#allocation7] sm:$0xff] %v160
    %179 = vst [vmem:[#allocation7 + $0x8] sm:$0xff] %v174
    %180 = vst [vmem:[#allocation7 + $0x10] sm:$0xff] %v162
    %181 = vst [vmem:[#allocation7 + $0x18] sm:$0xff] %v176
    // Predicated region
    $region22: #{transformer_forward.3} parent=1 // pred_check
      _
    $region23: #{transformer_forward.3} parent=1 // pred_check_branch
      %183 = sbr.rel (0) target = $region25
    $region24: #{transformer_forward.3} parent=1 // pred_region
      %185 = vsyncadd [#allocation4], 0
      %s186 = sshll.u32 [#allocation7], 4
      %s187 = int_to_ptr.vmem [resolvable:$true] %s186
      %s188 = sshll.u32 %s3, 4
      %s189 = int_to_ptr.hbm [resolvable:$true] %s188
      %194 = dma.vmem_to_hbm [thread:$0]  %s187, 512, %s189, [#allocation4], 256, 256, 16
    $region25: #{transformer_forward.3} parent=1 // pred_fallthru
      _
    // Predicated region
    $region26: #{transformer_forward.3} parent=1 // pred_check
      _
    $region27: #{transformer_forward.3} parent=1 // pred_check_branch
      %196 = sbr.rel (0) target = $region29
    $region28: #{transformer_forward.3} parent=1 // pred_region
      %198 = dma.done [#allocation4], 512
    $region29: #{transformer_forward.3} parent=1 // pred_fallthru
      _
    %199 = vsyncpa [#allocation3], 1
    %200 = vsyncpa [#allocation6], 1
    %201 = vsyncpa [#allocation4], 1

// kernel: transformer_forward.2
$region0: #{transformer_forward.2}
  #allocation0 [shape = 'u32[]', space=smem, size = 0x4, offset = 0x4, fixed_abs, tag = 'smem constant byte address 0x4 - core index']
  #allocation1 [shape = 'u32[72,128]{1,0:T(1,128)}', space=vmem, size = 0x9000, scoped, tag = 'internal scratch']
  %s0 = inlined_call_operand.vmem [shape: f32[16,128], index: 0, kind: input, shape index: {}]
  %s1 = inlined_call_operand.hbm [shape: bf16[128,384], index: 1, kind: input, shape index: {}]
  %s2 = inlined_call_operand.hbm [shape: bf16[128,128], index: 2, kind: input, shape index: {}]
  %s3 = inlined_call_operand.hbm [shape: bf16[128,256], index: 3, kind: input, shape index: {}]
  %s4 = inlined_call_operand.hbm [shape: bf16[256,128], index: 4, kind: input, shape index: {}]
  %s5 = inlined_call_operand.hbm [shape: f32[1,384], index: 5, kind: input, shape index: {}]
  %s6 = inlined_call_operand.hbm [shape: f32[1,256], index: 6, kind: input, shape index: {}]
  %s7 = inlined_call_operand.hbm [shape: f32[8,128], index: 7, kind: input, shape index: {}]
  %s8 = inlined_call_operand.vmem [shape: f32[16,128], index: 8, kind: output, shape index: {}]
  %s9 = sld [smem:[#allocation0]]
  $region70: #{transformer_forward.2} parent=0
    _
  %s11 = ssub.s32 1, %s9
  %s12 = scalar_select 0, %s11, %s9
  $region1: #{transformer_forward.2} parent=0
    #allocation2 [shape = 'u8[98304]{0}', space=vmem, size = 0x18000, scoped, tag = 'input window, operand 1, single buffered']
    #allocation3 [shape = 's32[1]{0}', space=sflag, size = 0x4, scoped, tag = 'scoped memory for transformer_forward.2']
    #allocation4 [shape = 'u8[32768]{0}', space=vmem, size = 0x8000, scoped, tag = 'input window, operand 2, single buffered']
    #allocation5 [shape = 's32[1]{0}', space=sflag, size = 0x4, scoped, tag = 'scoped memory for transformer_forward.2']
    #allocation6 [shape = 'u8[65536]{0}', space=vmem, size = 0x10000, scoped, tag = 'input window, operand 3, single buffered']
    #allocation7 [shape = 'u8[65536]{0}', space=vmem, size = 0x10000, scoped, tag = 'input window, operand 4, single buffered']
    #allocation8 [shape = 's32[1]{0}', space=sflag, size = 0x4, scoped, tag = 'scoped memory for transformer_forward.2']
    #allocation9 [shape = 'u8[1536]{0}', space=vmem, size = 0x800, scoped, tag = 'input window, operand 5, single buffered']
    #allocation10 [shape = 'u8[1024]{0}', space=vmem, size = 0x400, scoped, tag = 'input window, operand 6, single buffered']
    #allocation11 [shape = 's32[1]{0}', space=sflag, size = 0x4, scoped, tag = 'scoped memory for transformer_forward.2']
    #allocation12 [shape = 'u8[4096]{0}', space=vmem, size = 0x1000, scoped, tag = 'input window, operand 7, single buffered']
    %13 = vsyncpa [#allocation3], 0
    %14 = vsyncpa [#allocation5], 0
    %15 = vsyncpa [#allocation8], 0
    %16 = vsyncpa [#allocation11], 0
    // Predicated region
    $region2: #{transformer_forward.2} parent=1 // pred_check
      _
    $region3: #{transformer_forward.2} parent=1 // pred_check_branch
      %18 = sbr.rel (0) target = $region5
    $region4: #{transformer_forward.2} parent=1 // pred_region
      _
    $region5: #{transformer_forward.2} parent=1 // pred_fallthru
      _
    // Predicated region
    $region6: #{transformer_forward.2} parent=1 // pred_check
      _
    $region7: #{transformer_forward.2} parent=1 // pred_check_branch
      %20 = sbr.rel (0) target = $region9
    $region8: #{transformer_forward.2} parent=1 // pred_region
      %22 = vsyncadd [#allocation3], 0
      %s23 = sshll.u32 %s1, 4
      %s24 = int_to_ptr.hbm [resolvable:$true] %s23
      %s25 = sshll.u32 [#allocation2], 4
      %s26 = int_to_ptr.vmem [resolvable:$true] %s25
      %31 = dma.hbm_to_vmem [thread:$0]  %s24, 3072, %s26, [#allocation3], 192, 192, 12
    $region9: #{transformer_forward.2} parent=1 // pred_fallthru
      _
    // Predicated region
    $region10: #{transformer_forward.2} parent=1 // pred_check
      _
    $region11: #{transformer_forward.2} parent=1 // pred_check_branch
      %33 = sbr.rel (0) target = $region13
    $region12: #{transformer_forward.2} parent=1 // pred_region
      %35 = vsyncadd [#allocation5], 0
      %s36 = sshll.u32 %s2, 4
      %s37 = int_to_ptr.hbm [resolvable:$true] %s36
      %s38 = sshll.u32 [#allocation4], 4
      %s39 = int_to_ptr.vmem [resolvable:$true] %s38
      %44 = dma.hbm_to_vmem [thread:$0]  %s37, 1024, %s39, [#allocation5], 64, 64, 4
    $region13: #{transformer_forward.2} parent=1 // pred_fallthru
      _
    // Predicated region
    $region14: #{transformer_forward.2} parent=1 // pred_check
      _
    $region15: #{transformer_forward.2} parent=1 // pred_check_branch
      %46 = sbr.rel (0) target = $region17
    $region16: #{transformer_forward.2} parent=1 // pred_region
      %48 = vsyncadd [#allocation5], 0
      %s49 = sshll.u32 %s3, 4
      %s50 = int_to_ptr.hbm [resolvable:$true] %s49
      %s51 = sshll.u32 [#allocation6], 4
      %s52 = int_to_ptr.vmem [resolvable:$true] %s51
      %57 = dma.hbm_to_vmem [thread:$0]  %s50, 2048, %s52, [#allocation5], 128, 128, 8
    $region17: #{transformer_forward.2} parent=1 // pred_fallthru
      _
    // Predicated region
    $region18: #{transformer_forward.2} parent=1 // pred_check
      _
    $region19: #{transformer_forward.2} parent=1 // pred_check_branch
      %59 = sbr.rel (0) target = $region21
    $region20: #{transformer_forward.2} parent=1 // pred_region
      %61 = vsyncadd [#allocation8], 0
      %s62 = sshll.u32 %s4, 4
      %s63 = int_to_ptr.hbm [resolvable:$true] %s62
      %s64 = sshll.u32 [#allocation7], 4
      %s65 = int_to_ptr.vmem [resolvable:$true] %s64
      %70 = dma.hbm_to_vmem [thread:$0]  %s63, 2048, %s65, [#allocation8], 64, 64, 4
    $region21: #{transformer_forward.2} parent=1 // pred_fallthru
      _
    // Predicated region
    $region22: #{transformer_forward.2} parent=1 // pred_check
      _
    $region23: #{transformer_forward.2} parent=1 // pred_check_branch
      %72 = sbr.rel (0) target = $region25
    $region24: #{transformer_forward.2} parent=1 // pred_region
      %74 = vsyncadd [#allocation8], 0
      %s76 = sshll.u32 %s5, 4
      %s77 = int_to_ptr.hbm [resolvable:$true] %s76
      %s78 = sshll.u32 [#allocation9], 4
      %s79 = int_to_ptr.vmem [resolvable:$true] %s78
      %81 = dma.hbm_to_vmem [thread:$0]  %s77, 48, %s79, [#allocation8]
    $region25: #{transformer_forward.2} parent=1 // pred_fallthru
      _
    // Predicated region
    $region26: #{transformer_forward.2} parent=1 // pred_check
      _
    $region27: #{transformer_forward.2} parent=1 // pred_check_branch
      %83 = sbr.rel (0) target = $region29
    $region28: #{transformer_forward.2} parent=1 // pred_region
      %85 = vsyncadd [#allocation11], 0
      %s87 = sshll.u32 %s6, 4
      %s88 = int_to_ptr.hbm [resolvable:$true] %s87
      %s89 = sshll.u32 [#allocation10], 4
      %s90 = int_to_ptr.vmem [resolvable:$true] %s89
      %92 = dma.hbm_to_vmem [thread:$0]  %s88, 32, %s90, [#allocation11]
    $region29: #{transformer_forward.2} parent=1 // pred_fallthru
      _
    // Predicated region
    $region30: #{transformer_forward.2} parent=1 // pred_check
      _
    $region31: #{transformer_forward.2} parent=1 // pred_check_branch
      %94 = sbr.rel (0) target = $region33
    $region32: #{transformer_forward.2} parent=1 // pred_region
      %96 = vsyncadd [#allocation11], 0
      %s98 = sshll.u32 %s7, 4
      %s99 = int_to_ptr.hbm [resolvable:$true] %s98
      %s100 = sshll.u32 [#allocation12], 4
      %s101 = int_to_ptr.vmem [resolvable:$true] %s100
      %103 = dma.hbm_to_vmem [thread:$0]  %s99, 128, %s101, [#allocation11]
    $region33: #{transformer_forward.2} parent=1 // pred_fallthru
      _
    // Predicated region
    $region34: #{transformer_forward.2} parent=1 // pred_check
      _
    $region35: #{transformer_forward.2} parent=1 // pred_check_branch
      %105 = sbr.rel (0) target = $region37
    $region36: #{transformer_forward.2} parent=1 // pred_region
      %107 = dma.done [#allocation3], 3072
    $region37: #{transformer_forward.2} parent=1 // pred_fallthru
      _
    // Predicated region
    $region38: #{transformer_forward.2} parent=1 // pred_check
      _
    $region39: #{transformer_forward.2} parent=1 // pred_check_branch
      %109 = sbr.rel (0) target = $region41
    $region40: #{transformer_forward.2} parent=1 // pred_region
      %111 = dma.done [#allocation5], 1024
    $region41: #{transformer_forward.2} parent=1 // pred_fallthru
      _
    // Predicated region
    $region42: #{transformer_forward.2} parent=1 // pred_check
      _
    $region43: #{transformer_forward.2} parent=1 // pred_check_branch
      %113 = sbr.rel (0) target = $region45
    $region44: #{transformer_forward.2} parent=1 // pred_region
      %115 = dma.done [#allocation5], 2048
    $region45: #{transformer_forward.2} parent=1 // pred_fallthru
      _
    // Predicated region
    $region46: #{transformer_forward.2} parent=1 // pred_check
      _
    $region47: #{transformer_forward.2} parent=1 // pred_check_branch
      %117 = sbr.rel (0) target = $region49
    $region48: #{transformer_forward.2} parent=1 // pred_region
      %119 = dma.done [#allocation8], 2048
    $region49: #{transformer_forward.2} parent=1 // pred_fallthru
      _
    // Predicated region
    $region50: #{transformer_forward.2} parent=1 // pred_check
      _
    $region51: #{transformer_forward.2} parent=1 // pred_check_branch
      %121 = sbr.rel (0) target = $region53
    $region52: #{transformer_forward.2} parent=1 // pred_region
      %123 = dma.done [#allocation8], 48
    $region53: #{transformer_forward.2} parent=1 // pred_fallthru
      _
    // Predicated region
    $region54: #{transformer_forward.2} parent=1 // pred_check
      _
    $region55: #{transformer_forward.2} parent=1 // pred_check_branch
      %125 = sbr.rel (0) target = $region57
    $region56: #{transformer_forward.2} parent=1 // pred_region
      %127 = dma.done [#allocation11], 32
    $region57: #{transformer_forward.2} parent=1 // pred_fallthru
      _
    // Predicated region
    $region58: #{transformer_forward.2} parent=1 // pred_check
      _
    $region59: #{transformer_forward.2} parent=1 // pred_check_branch
      %129 = sbr.rel (0) target = $region61
    $region60: #{transformer_forward.2} parent=1 // pred_region
      %131 = dma.done [#allocation11], 128
    $region61: #{transformer_forward.2} parent=1 // pred_fallthru
      _
    %v133 = vld [vmem:[%s0] sm:$0xff]
    %v134 = vld [vmem:[%s0 + $0x8] sm:$0xff]
    %v135 = vld [vmem:[#allocation12] sm:$0x1]
    %v136 = vld [vmem:[#allocation12 + $0x1] sm:$0x1]
    %v137 = vld [vmem:[#allocation12 + $0x2] sm:$0x1]
    %v138 = vld [vmem:[#allocation12 + $0x3] sm:$0x1]
    %v139 = vld [vmem:[#allocation12 + $0x4] sm:$0x1]
    %v140 = vld [vmem:[#allocation12 + $0x5] sm:$0x1]
    %v141 = vpack.c.bf16 %v134, %v133
    %v142 = vld [vmem:[#allocation2] sm:$0xff]
    %v143 = vld [vmem:[#allocation2 + $0x8] sm:$0xf]
    %v144 = vld [vmem:[#allocation2 + $0xc] sm:$0xff]
    %v145 = vld [vmem:[#allocation2 + $0x14] sm:$0xf]
    %v146 = vld [vmem:[#allocation2 + $0x18] sm:$0xff]
    %v147 = vld [vmem:[#allocation2 + $0x20] sm:$0xf]
    %v148 = vld [vmem:[#allocation2 + $0x24] sm:$0xff]
    %v149 = vld [vmem:[#allocation2 + $0x2c] sm:$0xf]
    %v150 = vld [vmem:[#allocation2 + $0x30] sm:$0xff]
    %v151 = vld [vmem:[#allocation2 + $0x38] sm:$0xf]
    %v152 = vld [vmem:[#allocation2 + $0x3c] sm:$0xff]
    %v153 = vld [vmem:[#allocation2 + $0x44] sm:$0xf]
    %v154 = vld [vmem:[#allocation2 + $0x48] sm:$0xff]
    %v155 = vld [vmem:[#allocation2 + $0x50] sm:$0xf]
    %v156 = vld [vmem:[#allocation2 + $0x54] sm:$0xff]
    %v157 = vld [vmem:[#allocation2 + $0x5c] sm:$0xf]
    %v158 = vld [vmem:[#allocation2 + $0x60] sm:$0xff]
    %v159 = vld [vmem:[#allocation2 + $0x68] sm:$0xf]
    %v160 = vld [vmem:[#allocation2 + $0x6c] sm:$0xff]
    %v161 = vld [vmem:[#allocation2 + $0x74] sm:$0xf]
    %v162 = vld [vmem:[#allocation2 + $0x78] sm:$0xff]
    %v163 = vld [vmem:[#allocation2 + $0x80] sm:$0xf]
    %v164 = vld [vmem:[#allocation2 + $0x84] sm:$0xff]
    %v165 = vld [vmem:[#allocation2 + $0x8c] sm:$0xf]
    %v166 = vld [vmem:[#allocation2 + $0x90] sm:$0xff]
    %v167 = vld [vmem:[#allocation2 + $0x98] sm:$0xf]
    %v168 = vld [vmem:[#allocation2 + $0x9c] sm:$0xff]
    %v169 = vld [vmem:[#allocation2 + $0xa4] sm:$0xf]
    %v170 = vld [vmem:[#allocation2 + $0xa8] sm:$0xff]
    %v171 = vld [vmem:[#allocation2 + $0xb0] sm:$0xf]
    %v172 = vld [vmem:[#allocation2 + $0xb4] sm:$0xff]
    %v173 = vld [vmem:[#allocation2 + $0xbc] sm:$0xf]
    %v174 = vld [vmem:[#allocation9] sm:$0x7]
    %v176 = vperm.slane %v174, 0
    %v177 = vperm.slane %v174, 1
    %v178 = vperm.slane %v174, 2
    %v214 = vunpack.c.l.b16 %v142
    %v215 = vunpack.c.h.b16 %v142
    %v216 = vunpack.c.l.b16 %v143
    %v217 = vunpack.c.l.b16 %v144
    %v218 = vunpack.c.h.b16 %v144
    %v219 = vunpack.c.l.b16 %v145
    %v220 = vunpack.c.l.b16 %v146
    %v221 = vunpack.c.h.b16 %v146
    %v222 = vunpack.c.l.b16 %v147
    %v223 = vunpack.c.l.b16 %v148
    %v224 = vunpack.c.h.b16 %v148
    %v225 = vunpack.c.l.b16 %v149
    %v226 = vunpack.c.l.b16 %v150
    %v227 = vunpack.c.h.b16 %v150
    %v228 = vunpack.c.l.b16 %v151
    %v229 = vunpack.c.l.b16 %v152
    %v230 = vunpack.c.h.b16 %v152
    %v231 = vunpack.c.l.b16 %v153
    %v232 = vunpack.c.l.b16 %v154
    %v233 = vunpack.c.h.b16 %v154
    %v234 = vunpack.c.l.b16 %v155
    %v235 = vunpack.c.l.b16 %v156
    %v236 = vunpack.c.h.b16 %v156
    %v237 = vunpack.c.l.b16 %v157
    %v238 = vunpack.c.l.b16 %v158
    %v239 = vunpack.c.h.b16 %v158
    %v240 = vunpack.c.l.b16 %v159
    %v241 = vunpack.c.l.b16 %v160
    %v242 = vunpack.c.h.b16 %v160
    %v243 = vunpack.c.l.b16 %v161
    %v244 = vunpack.c.l.b16 %v162
    %v245 = vunpack.c.h.b16 %v162
    %v246 = vunpack.c.l.b16 %v163
    %v247 = vunpack.c.l.b16 %v164
    %v248 = vunpack.c.h.b16 %v164
    %v249 = vunpack.c.l.b16 %v165
    %v250 = vunpack.c.l.b16 %v166
    %v251 = vunpack.c.h.b16 %v166
    %v252 = vunpack.c.l.b16 %v167
    %v253 = vunpack.c.l.b16 %v168
    %v254 = vunpack.c.h.b16 %v168
    %v255 = vunpack.c.l.b16 %v169
    %v256 = vunpack.c.l.b16 %v170
    %v257 = vunpack.c.h.b16 %v170
    %v258 = vunpack.c.l.b16 %v171
    %v259 = vunpack.c.l.b16 %v172
    %v260 = vunpack.c.h.b16 %v172
    %v261 = vunpack.c.l.b16 %v173
    %v262 = vpack.c.b16 %v217, %v214
    %v263 = vpack.c.b16 %v218, %v215
    %v264 = vpack.c.b16 %v219, %v216
    %v265 = vpack.c.b16 %v223, %v220
    %v266 = vpack.c.b16 %v224, %v221
    %v267 = vpack.c.b16 %v225, %v222
    %v268 = vpack.c.b16 %v229, %v226
    %v269 = vpack.c.b16 %v230, %v227
    %v270 = vpack.c.b16 %v231, %v228
    %v271 = vpack.c.b16 %v235, %v232
    %v272 = vpack.c.b16 %v236, %v233
    %v273 = vpack.c.b16 %v237, %v234
    %v274 = vpack.c.b16 %v241, %v238
    %v275 = vpack.c.b16 %v242, %v239
    %v276 = vpack.c.b16 %v243, %v240
    %v277 = vpack.c.b16 %v247, %v244
    %v278 = vpack.c.b16 %v248, %v245
    %v279 = vpack.c.b16 %v249, %v246
    %v280 = vpack.c.b16 %v253, %v250
    %v281 = vpack.c.b16 %v254, %v251
    %v282 = vpack.c.b16 %v255, %v252
    %v283 = vpack.c.b16 %v259, %v256
    %v284 = vpack.c.b16 %v260, %v257
    %v285 = vpack.c.b16 %v261, %v258
    %310 = vmatpush.bf16.msra.mxu0 %v283
    %311 = vmatpush.bf16.msra.mxu0 %v280
    %312 = vmatpush.bf16.msra.mxu0 %v277
    %313 = vmatpush.bf16.msra.mxu0 %v274
    %314 = vmatpush.bf16.msra.mxu0 %v271
    %315 = vmatpush.bf16.msra.mxu0 %v268
    %316 = vmatpush.bf16.msra.mxu0 %v265
    %317 = vmatpush.bf16.msra.mxu0 %v262
    %318 = vmatmul.bf16.gmra.mxu0 %v141
    %v319 = vpop.f32.mrf.mxu0
    %v320 = vadd.f32 %v176, %v319
    %v321 = vpop.f32.mrf.mxu0
    %v322 = vadd.f32 %v176, %v321
    %323 = vdwg.mxu0
    %324 = vmatpush.bf16.msra.mxu0 %v284
    %325 = vmatpush.bf16.msra.mxu0 %v281
    %326 = vmatpush.bf16.msra.mxu0 %v278
    %327 = vmatpush.bf16.msra.mxu0 %v275
    %328 = vmatpush.bf16.msra.mxu0 %v272
    %329 = vmatpush.bf16.msra.mxu0 %v269
    %330 = vmatpush.bf16.msra.mxu0 %v266
    %331 = vmatpush.bf16.msra.mxu0 %v263
    %332 = vmatmul.bf16.gmra.mxu0 %v141
    %v333 = vpop.f32.mrf.mxu0
    %v334 = vadd.f32 %v177, %v333
    %v335 = vpop.f32.mrf.mxu0
    %v336 = vadd.f32 %v177, %v335
    %337 = vdwg.mxu0
    %338 = vmatpush.bf16.msra.mxu0 %v285
    %339 = vmatpush.bf16.msra.mxu0 %v282
    %340 = vmatpush.bf16.msra.mxu0 %v279
    %341 = vmatpush.bf16.msra.mxu0 %v276
    %342 = vmatpush.bf16.msra.mxu0 %v273
    %343 = vmatpush.bf16.msra.mxu0 %v270
    %344 = vmatpush.bf16.msra.mxu0 %v267
    %345 = vmatpush.bf16.msra.mxu0 %v264
    %346 = vmatmul.bf16.gmra.mxu0 %v141
    %v347 = vpop.f32.mrf.mxu0
    %v348 = vadd.f32 %v178, %v347
    %v349 = vpop.f32.mrf.mxu0
    %v350 = vadd.f32 %v178, %v349
    %351 = vdwg.mxu0
    %v352 = vpack.c.bf16 %v320, %v320
    %v353 = vpack.c.bf16 %v322, %v322
    %v354 = vpack.c.bf16 %v334, %v334
    %v355 = vpack.c.bf16 %v336, %v336
    %v356 = vpack.c.bf16 %v348, %v348
    %v357 = vpack.c.bf16 %v350, %v350
    %358 = vmatpush.bf16.xpose.msra.mxu0 0
    %359 = vmatpush.bf16.xpose.msra.mxu0 0
    %360 = vmatpush.bf16.xpose.msra.mxu0 0
    %361 = vmatpush.bf16.xpose.msra.mxu0 0
    %362 = vmatpush.bf16.xpose.msra.mxu0 0
    %363 = vmatpush.bf16.xpose.msra.mxu0 0
    %364 = vmatpush.bf16.xpose.msra.mxu0 0
    %365 = vmatpush.bf16.xpose.msra.mxu0 %v354
    %366 = vmatmul.bf16.gmra.mxu0 %v352
    %v367 = vpop.f32.mrf.mxu0
    %v368 = vadd.f32 0.0, %v367
    %v369 = vpop.f32.mrf.mxu0
    %370 = vdwg.mxu0
    %371 = vmatpush.bf16.xpose.msra.mxu0 0
    %372 = vmatpush.bf16.xpose.msra.mxu0 0
    %373 = vmatpush.bf16.xpose.msra.mxu0 0
    %374 = vmatpush.bf16.xpose.msra.mxu0 0
    %375 = vmatpush.bf16.xpose.msra.mxu0 0
    %376 = vmatpush.bf16.xpose.msra.mxu0 0
    %377 = vmatpush.bf16.xpose.msra.mxu0 0
    %378 = vmatpush.bf16.xpose.msra.mxu0 %v355
    %379 = vmatmul.bf16.gmra.mxu0 %v353
    %v380 = vpop.f32.mrf.mxu0
    %v381 = vadd.f32 0.0, %v380
    %v382 = vpop.f32.mrf.mxu0
    %383 = vdwg.mxu0
    %vm384 = vcmask 64512
    %v385 = vsel %vm384, %v368, -inf
    %386 = vmax.xlane.f32.xlu0 %v385
    %v387 = vpop.xlane.xlu0 %386
    %v388 = vsel %vm384, %v381, -inf
    %389 = vmax.xlane.f32.xlu0 %v388
    %v390 = vpop.xlane.xlu0 %389
    %v391 = vsub.f32 %v368, %v387
    %v392 = vsub.f32 %v381, %v390
    %v393 = vmul.f32 %v391, 1.442695
    %v394 = vpow.pop %v393
    %v395 = vmul.f32 %v392, 1.442695
    %v396 = vpow.pop %v395
    %v397 = vsel %vm384, %v394, 0.0
    %398 = vadd.xlane.f32.xlu0 %v397
    %v399 = vpop.xlane.xlu0 %398
    %v400 = vsel %vm384, %v396, 0.0
    %401 = vadd.xlane.f32.xlu0 %v400
    %v402 = vpop.xlane.xlu0 %401
    %v403 = vpack.c.bf16 %v394, %v394
    %v404 = vpack.c.bf16 %v396, %v396
    %v406 = vsel %vm384, %v403, 0
    %vm408 = vcmask 1043456
    %v410 = vsel %vm408, %v356, 0
    %412 = vmatpush.bf16.msra.mxu0 0
    %413 = vmatpush.bf16.msra.mxu0 0
    %414 = vmatpush.bf16.msra.mxu0 0
    %415 = vmatpush.bf16.msra.mxu0 0
    %416 = vmatpush.bf16.msra.mxu0 0
    %417 = vmatpush.bf16.msra.mxu0 0
    %418 = vmatpush.bf16.msra.mxu0 0
    %419 = vmatpush.bf16.msra.mxu0 %v410
    %420 = vmatmul.bf16.gmra.mxu0 %v406
    %v421 = vpop.f32.mrf.mxu0
    %v422 = vadd.f32 0.0, %v421
    %v423 = vpop.f32.mrf.mxu0
    %424 = vdwg.mxu0
    %v426 = vsel %vm384, %v404, 0
    %v429 = vsel %vm408, %v357, 0
    %431 = vmatpush.bf16.msra.mxu0 0
    %432 = vmatpush.bf16.msra.mxu0 0
    %433 = vmatpush.bf16.msra.mxu0 0
    %434 = vmatpush.bf16.msra.mxu0 0
    %435 = vmatpush.bf16.msra.mxu0 0
    %436 = vmatpush.bf16.msra.mxu0 0
    %437 = vmatpush.bf16.msra.mxu0 0
    %438 = vmatpush.bf16.msra.mxu0 %v429
    %439 = vmatmul.bf16.gmra.mxu0 %v426
    %v440 = vpop.f32.mrf.mxu0
    %v441 = vadd.f32 0.0, %v440
    %v442 = vpop.f32.mrf.mxu0
    %443 = vdwg.mxu0
    %v444 = vrcp.pop %v399
    %v445 = vrcp.pop %v402
    %v446 = vmul.f32 %v422, %v444
    %v447 = vmul.f32 %v441, %v445
    %v448 = vpack.c.bf16 %v447, %v446
    %v449 = vld [vmem:[#allocation4] sm:$0xf]
    %v450 = vld [vmem:[#allocation4 + $0x4] sm:$0xf]
    %v451 = vld [vmem:[#allocation4 + $0x8] sm:$0xf]
    %v452 = vld [vmem:[#allocation4 + $0xc] sm:$0xf]
    %v453 = vld [vmem:[#allocation4 + $0x10] sm:$0xf]
    %v454 = vld [vmem:[#allocation4 + $0x14] sm:$0xf]
    %v455 = vld [vmem:[#allocation4 + $0x18] sm:$0xf]
    %v456 = vld [vmem:[#allocation4 + $0x1c] sm:$0xf]
    %v457 = vld [vmem:[#allocation4 + $0x20] sm:$0xf]
    %v458 = vld [vmem:[#allocation4 + $0x24] sm:$0xf]
    %v459 = vld [vmem:[#allocation4 + $0x28] sm:$0xf]
    %v460 = vld [vmem:[#allocation4 + $0x2c] sm:$0xf]
    %v461 = vld [vmem:[#allocation4 + $0x30] sm:$0xf]
    %v462 = vld [vmem:[#allocation4 + $0x34] sm:$0xf]
    %v463 = vld [vmem:[#allocation4 + $0x38] sm:$0xf]
    %v464 = vld [vmem:[#allocation4 + $0x3c] sm:$0xf]
    %v465 = vperm.slane %v135, 0
    %v482 = vunpack.c.l.b16 %v449
    %v483 = vunpack.c.l.b16 %v450
    %v484 = vunpack.c.l.b16 %v451
    %v485 = vunpack.c.l.b16 %v452
    %v486 = vunpack.c.l.b16 %v453
    %v487 = vunpack.c.l.b16 %v454
    %v488 = vunpack.c.l.b16 %v455
    %v489 = vunpack.c.l.b16 %v456
    %v490 = vunpack.c.l.b16 %v457
    %v491 = vunpack.c.l.b16 %v458
    %v492 = vunpack.c.l.b16 %v459
    %v493 = vunpack.c.l.b16 %v460
    %v494 = vunpack.c.l.b16 %v461
    %v495 = vunpack.c.l.b16 %v462
    %v496 = vunpack.c.l.b16 %v463
    %v497 = vunpack.c.l.b16 %v464
    %v498 = vpack.c.b16 %v483, %v482
    %v499 = vpack.c.b16 %v485, %v484
    %v500 = vpack.c.b16 %v487, %v486
    %v501 = vpack.c.b16 %v489, %v488
    %v502 = vpack.c.b16 %v491, %v490
    %v503 = vpack.c.b16 %v493, %v492
    %v504 = vpack.c.b16 %v495, %v494
    %v505 = vpack.c.b16 %v497, %v496
    %514 = vmatpush.bf16.msra.mxu0 %v505
    %515 = vmatpush.bf16.msra.mxu0 %v504
    %516 = vmatpush.bf16.msra.mxu0 %v503
    %517 = vmatpush.bf16.msra.mxu0 %v502
    %518 = vmatpush.bf16.msra.mxu0 %v501
    %519 = vmatpush.bf16.msra.mxu0 %v500
    %520 = vmatpush.bf16.msra.mxu0 %v499
    %521 = vmatpush.bf16.msra.mxu0 %v498
    %522 = vmatmul.bf16.gmra.mxu0 %v448
    %v523 = vpop.f32.mrf.mxu0
    %v524 = vadd.f32 %v465, %v523
    %v525 = vpop.f32.mrf.mxu0
    %v526 = vadd.f32 %v465, %v525
    %527 = vdwg.mxu0
    %v528 = vadd.f32 %v133, %v524
    %v529 = vadd.f32 %v134, %v526
    %530 = vadd.xlane.f32.xlu0 %v528
    %v531 = vpop.xlane.xlu0 %530
    %532 = vadd.xlane.f32.xlu0 %v529
    %v533 = vpop.xlane.xlu0 %532
    %v534 = vrcp.pop 128.0
    %v535 = vmul.f32 128.0, %v534
    %v536 = vsub.f32 1.0, %v535
    %v537 = vmul.f32 %v534, %v536
    %v538 = vadd.f32 %v534, %v537
    %vm539 = vweird.f32 %v534
    %v540 = vsel %vm539, %v534, %v538
    %v541 = vmul.f32 %v531, %v540
    %v542 = vmul.f32 %v533, %v540
    %v543 = vsub.f32 %v528, %v541
    %v544 = vsub.f32 %v529, %v542
    %v545 = vmul.f32 %v543, %v543
    %v546 = vmul.f32 %v544, %v544
    %547 = vadd.xlane.f32.xlu0 %v545
    %v548 = vpop.xlane.xlu0 %547
    %549 = vadd.xlane.f32.xlu0 %v546
    %v550 = vpop.xlane.xlu0 %549
    %v551 = vmul.f32 %v548, %v540
    %v552 = vmul.f32 %v550, %v540
    %v553 = vadd.f32 %v551, 1e-05
    %v554 = vadd.f32 %v552, 1e-05
    %v555 = vrsqrt.pop %v553
    %v556 = vmul.f32 %v555, %v553
    %v557 = vmul.f32 %v556, %v555
    %v558 = vmul.f32 0.5, %v557
    %v559 = vsub.f32 1.5, %v558
    %v560 = vmul.f32 %v555, %v559
    %vm561 = vweird.f32 %v553
    %vm562 = vweird.f32 %v555
    %vm563 = vmor %vm561, %vm562
    %v564 = vsel %vm563, %v555, %v560
    %v565 = vrsqrt.pop %v554
    %v566 = vmul.f32 %v565, %v554
    %v567 = vmul.f32 %v566, %v565
    %v568 = vmul.f32 0.5, %v567
    %v569 = vsub.f32 1.5, %v568
    %v570 = vmul.f32 %v565, %v569
    %vm571 = vweird.f32 %v554
    %vm572 = vweird.f32 %v565
    %vm573 = vmor %vm571, %vm572
    %v574 = vsel %vm573, %v565, %v570
    %v575 = vmul.f32 %v543, %v564
    %v576 = vmul.f32 %v544, %v574
    %v577 = vperm.slane %v136, 0
    %v578 = vmul.f32 %v575, %v577
    %v579 = vmul.f32 %v576, %v577
    %v580 = vperm.slane %v137, 0
    %v581 = vadd.f32 %v578, %v580
    %v582 = vadd.f32 %v579, %v580
    %v583 = vpack.c.bf16 %v582, %v581
    %v584 = vld [vmem:[#allocation6] sm:$0xff]
    %v585 = vld [vmem:[#allocation6 + $0x8] sm:$0xff]
    %v586 = vld [vmem:[#allocation6 + $0x10] sm:$0xff]
    %v587 = vld [vmem:[#allocation6 + $0x18] sm:$0xff]
    %v588 = vld [vmem:[#allocation6 + $0x20] sm:$0xff]
    %v589 = vld [vmem:[#allocation6 + $0x28] sm:$0xff]
    %v590 = vld [vmem:[#allocation6 + $0x30] sm:$0xff]
    %v591 = vld [vmem:[#allocation6 + $0x38] sm:$0xff]
    %v592 = vld [vmem:[#allocation6 + $0x40] sm:$0xff]
    %v593 = vld [vmem:[#allocation6 + $0x48] sm:$0xff]
    %v594 = vld [vmem:[#allocation6 + $0x50] sm:$0xff]
    %v595 = vld [vmem:[#allocation6 + $0x58] sm:$0xff]
    %v596 = vld [vmem:[#allocation6 + $0x60] sm:$0xff]
    %v597 = vld [vmem:[#allocation6 + $0x68] sm:$0xff]
    %v598 = vld [vmem:[#allocation6 + $0x70] sm:$0xff]
    %v599 = vld [vmem:[#allocation6 + $0x78] sm:$0xff]
    %v600 = vld [vmem:[#allocation10] sm:$0x3]
    %v602 = vperm.slane %v600, 0
    %v603 = vperm.slane %v600, 1
    %v622 = vunpack.c.l.b16 %v584
    %v623 = vunpack.c.h.b16 %v584
    %v624 = vunpack.c.l.b16 %v585
    %v625 = vunpack.c.h.b16 %v585
    %v626 = vunpack.c.l.b16 %v586
    %v627 = vunpack.c.h.b16 %v586
    %v628 = vunpack.c.l.b16 %v587
    %v629 = vunpack.c.h.b16 %v587
    %v630 = vunpack.c.l.b16 %v588
    %v631 = vunpack.c.h.b16 %v588
    %v632 = vunpack.c.l.b16 %v589
    %v633 = vunpack.c.h.b16 %v589
    %v634 = vunpack.c.l.b16 %v590
    %v635 = vunpack.c.h.b16 %v590
    %v636 = vunpack.c.l.b16 %v591
    %v637 = vunpack.c.h.b16 %v591
    %v638 = vunpack.c.l.b16 %v592
    %v639 = vunpack.c.h.b16 %v592
    %v640 = vunpack.c.l.b16 %v593
    %v641 = vunpack.c.h.b16 %v593
    %v642 = vunpack.c.l.b16 %v594
    %v643 = vunpack.c.h.b16 %v594
    %v644 = vunpack.c.l.b16 %v595
    %v645 = vunpack.c.h.b16 %v595
    %v646 = vunpack.c.l.b16 %v596
    %v647 = vunpack.c.h.b16 %v596
    %v648 = vunpack.c.l.b16 %v597
    %v649 = vunpack.c.h.b16 %v597
    %v650 = vunpack.c.l.b16 %v598
    %v651 = vunpack.c.h.b16 %v598
    %v652 = vunpack.c.l.b16 %v599
    %v653 = vunpack.c.h.b16 %v599
    %v654 = vpack.c.b16 %v624, %v622
    %v655 = vpack.c.b16 %v625, %v623
    %v656 = vpack.c.b16 %v628, %v626
    %v657 = vpack.c.b16 %v629, %v627
    %v658 = vpack.c.b16 %v632, %v630
    %v659 = vpack.c.b16 %v633, %v631
    %v660 = vpack.c.b16 %v636, %v634
    %v661 = vpack.c.b16 %v637, %v635
    %v662 = vpack.c.b16 %v640, %v638
    %v663 = vpack.c.b16 %v641, %v639
    %v664 = vpack.c.b16 %v644, %v642
    %v665 = vpack.c.b16 %v645, %v643
    %v666 = vpack.c.b16 %v648, %v646
    %v667 = vpack.c.b16 %v649, %v647
    %v668 = vpack.c.b16 %v652, %v650
    %v669 = vpack.c.b16 %v653, %v651
    %686 = vmatpush.bf16.msra.mxu0 %v668
    %687 = vmatpush.bf16.msra.mxu0 %v666
    %688 = vmatpush.bf16.msra.mxu0 %v664
    %689 = vmatpush.bf16.msra.mxu0 %v662
    %690 = vmatpush.bf16.msra.mxu0 %v660
    %691 = vmatpush.bf16.msra.mxu0 %v658
    %692 = vmatpush.bf16.msra.mxu0 %v656
    %693 = vmatpush.bf16.msra.mxu0 %v654
    %694 = vmatmul.bf16.gmra.mxu0 %v583
    %v695 = vpop.f32.mrf.mxu0
    %v696 = vadd.f32 %v602, %v695
    %v697 = vpop.f32.mrf.mxu0
    %v698 = vadd.f32 %v602, %v697
    %699 = vdwg.mxu0
    %700 = vmatpush.bf16.msra.mxu0 %v669
    %701 = vmatpush.bf16.msra.mxu0 %v667
    %702 = vmatpush.bf16.msra.mxu0 %v665
    %703 = vmatpush.bf16.msra.mxu0 %v663
    %704 = vmatpush.bf16.msra.mxu0 %v661
    %705 = vmatpush.bf16.msra.mxu0 %v659
    %706 = vmatpush.bf16.msra.mxu0 %v657
    %707 = vmatpush.bf16.msra.mxu0 %v655
    %708 = vmatmul.bf16.gmra.mxu0 %v583
    %v709 = vpop.f32.mrf.mxu0
    %v710 = vadd.f32 %v603, %v709
    %v711 = vpop.f32.mrf.mxu0
    %v712 = vadd.f32 %v603, %v711
    %713 = vdwg.mxu0
    %v714 = vmax.f32 %v696, 0.0
    %v715 = vmax.f32 %v710, 0.0
    %v716 = vmax.f32 %v698, 0.0
    %v717 = vmax.f32 %v712, 0.0
    %v718 = vpack.c.bf16 %v716, %v714
    %v719 = vpack.c.bf16 %v717, %v715
    %v720 = vld [vmem:[#allocation7] sm:$0xf]
    %v721 = vld [vmem:[#allocation7 + $0x4] sm:$0xf]
    %v722 = vld [vmem:[#allocation7 + $0x8] sm:$0xf]
    %v723 = vld [vmem:[#allocation7 + $0xc] sm:$0xf]
    %v724 = vld [vmem:[#allocation7 + $0x10] sm:$0xf]
    %v725 = vld [vmem:[#allocation7 + $0x14] sm:$0xf]
    %v726 = vld [vmem:[#allocation7 + $0x18] sm:$0xf]
    %v727 = vld [vmem:[#allocation7 + $0x1c] sm:$0xf]
    %v728 = vld [vmem:[#allocation7 + $0x20] sm:$0xf]
    %v729 = vld [vmem:[#allocation7 + $0x24] sm:$0xf]
    %v730 = vld [vmem:[#allocation7 + $0x28] sm:$0xf]
    %v731 = vld [vmem:[#allocation7 + $0x2c] sm:$0xf]
    %v732 = vld [vmem:[#allocation7 + $0x30] sm:$0xf]
    %v733 = vld [vmem:[#allocation7 + $0x34] sm:$0xf]
    %v734 = vld [vmem:[#allocation7 + $0x38] sm:$0xf]
    %v735 = vld [vmem:[#allocation7 + $0x3c] sm:$0xf]
    %v736 = vld [vmem:[#allocation7 + $0x40] sm:$0xf]
    %v737 = vld [vmem:[#allocation7 + $0x44] sm:$0xf]
    %v738 = vld [vmem:[#allocation7 + $0x48] sm:$0xf]
    %v739 = vld [vmem:[#allocation7 + $0x4c] sm:$0xf]
    %v740 = vld [vmem:[#allocation7 + $0x50] sm:$0xf]
    %v741 = vld [vmem:[#allocation7 + $0x54] sm:$0xf]
    %v742 = vld [vmem:[#allocation7 + $0x58] sm:$0xf]
    %v743 = vld [vmem:[#allocation7 + $0x5c] sm:$0xf]
    %v744 = vld [vmem:[#allocation7 + $0x60] sm:$0xf]
    %v745 = vld [vmem:[#allocation7 + $0x64] sm:$0xf]
    %v746 = vld [vmem:[#allocation7 + $0x68] sm:$0xf]
    %v747 = vld [vmem:[#allocation7 + $0x6c] sm:$0xf]
    %v748 = vld [vmem:[#allocation7 + $0x70] sm:$0xf]
    %v749 = vld [vmem:[#allocation7 + $0x74] sm:$0xf]
    %v750 = vld [vmem:[#allocation7 + $0x78] sm:$0xf]
    %v751 = vld [vmem:[#allocation7 + $0x7c] sm:$0xf]
    %v752 = vperm.slane %v138, 0
    %v785 = vunpack.c.l.b16 %v720
    %v786 = vunpack.c.l.b16 %v721
    %v787 = vunpack.c.l.b16 %v722
    %v788 = vunpack.c.l.b16 %v723
    %v789 = vunpack.c.l.b16 %v724
    %v790 = vunpack.c.l.b16 %v725
    %v791 = vunpack.c.l.b16 %v726
    %v792 = vunpack.c.l.b16 %v727
    %v793 = vunpack.c.l.b16 %v728
    %v794 = vunpack.c.l.b16 %v729
    %v795 = vunpack.c.l.b16 %v730
    %v796 = vunpack.c.l.b16 %v731
    %v797 = vunpack.c.l.b16 %v732
    %v798 = vunpack.c.l.b16 %v733
    %v799 = vunpack.c.l.b16 %v734
    %v800 = vunpack.c.l.b16 %v735
    %v801 = vunpack.c.l.b16 %v736
    %v802 = vunpack.c.l.b16 %v737
    %v803 = vunpack.c.l.b16 %v738
    %v804 = vunpack.c.l.b16 %v739
    %v805 = vunpack.c.l.b16 %v740
    %v806 = vunpack.c.l.b16 %v741
    %v807 = vunpack.c.l.b16 %v742
    %v808 = vunpack.c.l.b16 %v743
    %v809 = vunpack.c.l.b16 %v744
    %v810 = vunpack.c.l.b16 %v745
    %v811 = vunpack.c.l.b16 %v746
    %v812 = vunpack.c.l.b16 %v747
    %v813 = vunpack.c.l.b16 %v748
    %v814 = vunpack.c.l.b16 %v749
    %v815 = vunpack.c.l.b16 %v750
    %v816 = vunpack.c.l.b16 %v751
    %v817 = vpack.c.b16 %v786, %v785
    %v818 = vpack.c.b16 %v788, %v787
    %v819 = vpack.c.b16 %v790, %v789
    %v820 = vpack.c.b16 %v792, %v791
    %v821 = vpack.c.b16 %v794, %v793
    %v822 = vpack.c.b16 %v796, %v795
    %v823 = vpack.c.b16 %v798, %v797
    %v824 = vpack.c.b16 %v800, %v799
    %v825 = vpack.c.b16 %v802, %v801
    %v826 = vpack.c.b16 %v804, %v803
    %v827 = vpack.c.b16 %v806, %v805
    %v828 = vpack.c.b16 %v808, %v807
    %v829 = vpack.c.b16 %v810, %v809
    %v830 = vpack.c.b16 %v812, %v811
    %v831 = vpack.c.b16 %v814, %v813
    %v832 = vpack.c.b16 %v816, %v815
    %849 = vmatpush.bf16.msra.mxu0 %v824
    %850 = vmatpush.bf16.msra.mxu0 %v823
    %851 = vmatpush.bf16.msra.mxu0 %v822
    %852 = vmatpush.bf16.msra.mxu0 %v821
    %853 = vmatpush.bf16.msra.mxu0 %v820
    %854 = vmatpush.bf16.msra.mxu0 %v819
    %855 = vmatpush.bf16.msra.mxu0 %v818
    %856 = vmatpush.bf16.msra.mxu0 %v817
    %857 = vmatmul.bf16.gmra.mxu0 %v718
    %v858 = vpop.f32.mrf.mxu0
    %v859 = vadd.f32 %v752, %v858
    %v860 = vpop.f32.mrf.mxu0
    %v861 = vadd.f32 %v752, %v860
    %862 = vdwg.mxu0
    %863 = vmatpush.bf16.msra.mxu0 %v832
    %864 = vmatpush.bf16.msra.mxu0 %v831
    %865 = vmatpush.bf16.msra.mxu0 %v830
    %866 = vmatpush.bf16.msra.mxu0 %v829
    %867 = vmatpush.bf16.msra.mxu0 %v828
    %868 = vmatpush.bf16.msra.mxu0 %v827
    %869 = vmatpush.bf16.msra.mxu0 %v826
    %870 = vmatpush.bf16.msra.mxu0 %v825
    %871 = vmatmul.bf16.gmra.mxu0 %v719
    %v872 = vpop.f32.mrf.mxu0
    %v873 = vadd.f32 %v859, %v872
    %v874 = vpop.f32.mrf.mxu0
    %v875 = vadd.f32 %v861, %v874
    %876 = vdwg.mxu0
    %v877 = vadd.f32 %v581, %v873
    %v878 = vadd.f32 %v582, %v875
    %879 = vadd.xlane.f32.xlu0 %v877
    %v880 = vpop.xlane.xlu0 %879
    %881 = vadd.xlane.f32.xlu0 %v878
    %v882 = vpop.xlane.xlu0 %881
    %v883 = vmul.f32 %v880, %v540
    %v884 = vmul.f32 %v882, %v540
    %v885 = vsub.f32 %v877, %v883
    %v886 = vsub.f32 %v878, %v884
    %v887 = vmul.f32 %v885, %v885
    %v888 = vmul.f32 %v886, %v886
    %889 = vadd.xlane.f32.xlu0 %v887
    %v890 = vpop.xlane.xlu0 %889
    %891 = vadd.xlane.f32.xlu0 %v888
    %v892 = vpop.xlane.xlu0 %891
    %v893 = vmul.f32 %v890, %v540
    %v894 = vmul.f32 %v892, %v540
    %v895 = vadd.f32 %v893, 1e-05
    %v896 = vadd.f32 %v894, 1e-05
    %v897 = vrsqrt.pop %v895
    %v898 = vmul.f32 %v897, %v895
    %v899 = vmul.f32 %v898, %v897
    %v900 = vmul.f32 0.5, %v899
    %v901 = vsub.f32 1.5, %v900
    %v902 = vmul.f32 %v897, %v901
    %vm903 = vweird.f32 %v895
    %vm904 = vweird.f32 %v897
    %vm905 = vmor %vm903, %vm904
    %v906 = vsel %vm905, %v897, %v902
    %v907 = vrsqrt.pop %v896
    %v908 = vmul.f32 %v907, %v896
    %v909 = vmul.f32 %v908, %v907
    %v910 = vmul.f32 0.5, %v909
    %v911 = vsub.f32 1.5, %v910
    %v912 = vmul.f32 %v907, %v911
    %vm913 = vweird.f32 %v896
    %vm914 = vweird.f32 %v907
    %vm915 = vmor %vm913, %vm914
    %v916 = vsel %vm915, %v907, %v912
    %v917 = vmul.f32 %v885, %v906
    %v918 = vmul.f32 %v886, %v916
    %v919 = vperm.slane %v139, 0
    %v920 = vmul.f32 %v917, %v919
    %v921 = vmul.f32 %v918, %v919
    %v922 = vperm.slane %v140, 0
    %v923 = vadd.f32 %v920, %v922
    %v924 = vadd.f32 %v921, %v922
    %925 = vst [vmem:[%s8] sm:$0xff] %v923
    %926 = vst [vmem:[%s8 + $0x8] sm:$0xff] %v924
    // Predicated region
    $region62: #{transformer_forward.2} parent=1 // pred_check
      _
    $region63: #{transformer_forward.2} parent=1 // pred_check_branch
      %928 = sbr.rel (0) target = $region65
    $region64: #{transformer_forward.2} parent=1 // pred_region
      _
    $region65: #{transformer_forward.2} parent=1 // pred_fallthru
      _
    // Predicated region
    $region66: #{transformer_forward.2} parent=1 // pred_check
      _
    $region67: #{transformer_forward.2} parent=1 // pred_check_branch
      %930 = sbr.rel (0) target = $region69
    $region68: #{transformer_forward.2} parent=1 // pred_region
      _
    $region69: #{transformer_forward.2} parent=1 // pred_fallthru
      _
    %931 = vsyncpa [#allocation3], 1
    %932 = vsyncpa [#allocation5], 1
    %933 = vsyncpa [#allocation8], 1
    %934 = vsyncpa [#allocation11], 1

</llo_original>
